<compile_context>
chip_gen: v5e
topology: v5e:2x2
jax: 0.10.0
libtpu: 0.0.40
codegen_flags: <defaults>
</compile_context>

<pallas_src>
import functools

import jax
import jax.numpy as jnp
from jax.experimental import pallas as pl
from jax.experimental.pallas import tpu as pltpu

NUM_FOLDS = 10


def _fused_ensemble_kernel(x_ref, w1_ref, b1_ref, w2_ref, b2_ref, o_ref,
                           *, inv_folds):
    """Single invocation = whole ensemble for one batch tile.

    x_ref : (bm, D)      batch tile of the shared input
    w1_ref: (D, F*H)     all folds' first-layer weights, concatenated on N
    b1_ref: (1, F*H)     all folds' first-layer biases
    w2_ref: (F*H, C)     all folds' second-layer weights, stacked on K
    b2_ref: (1, C)       mean of the second-layer biases over folds
    o_ref : (bm, C)      ensemble-mean output
    """
    # First layer for every fold at once: (bm, D) @ (D, F*H) -> (bm, F*H).
    h = jnp.dot(x_ref[...], w1_ref[...], preferred_element_type=jnp.float32)
    h = jnp.maximum(h + b1_ref[...], 0.0)

    # The per-fold second matmul + sum over folds is exactly one contraction
    # over the fused F*H axis: (bm, F*H) @ (F*H, C) -> (bm, C).
    y = jnp.dot(h, w2_ref[...], preferred_element_type=jnp.float32)

    # Mean over folds = scale by 1/F; fold-averaged bias added once.
    o_ref[...] = (y * inv_folds + b2_ref[...]).astype(o_ref.dtype)


def merge_split_baseline(x, w1, b1, w2, b2, *, bm=None):
    """x: (B, D); w1: (F, D, H); b1: (F, H); w2: (F, H, C); b2: (F, C)."""
    B, D = x.shape
    F, _, H = w1.shape
    C = w2.shape[-1]
    FH = F * H

    # Fuse the ensemble in the wrapper (cheap, one-time reshapes/transposes).
    # Column ordering of w1cat (f-major, then h) matches the row ordering of
    # w2stk so the fused contraction is exact.
    w1cat = jnp.transpose(w1, (1, 0, 2)).reshape(D, FH)   # (D, F*H)
    b1cat = b1.reshape(1, FH)                             # (1, F*H)
    w2stk = w2.reshape(FH, C)                             # (F*H, C)
    b2mean = jnp.mean(b2, axis=0).reshape(1, C)           # (1, C)

    # Batch tile: single step at small B; tiles of 128 rows otherwise.
    if bm is None:
        bm = B if B <= 256 else 128
    assert B % bm == 0, "demo wrapper assumes bm divides B"
    grid = (B // bm,)

    kernel = functools.partial(_fused_ensemble_kernel, inv_folds=1.0 / F)

    return pl.pallas_call(
        kernel,
        out_shape=jax.ShapeDtypeStruct((B, C), x.dtype),
        grid=grid,
        in_specs=[
            pl.BlockSpec((bm, D), lambda i: (i, 0)),    # x batch tile
            pl.BlockSpec((D, FH), lambda i: (0, 0)),    # W1cat (shared)
            pl.BlockSpec((1, FH), lambda i: (0, 0)),    # b1cat (shared)
            pl.BlockSpec((FH, C), lambda i: (0, 0)),    # W2stack (shared)
            pl.BlockSpec((1, C), lambda i: (0, 0)),     # mean(b2) (shared)
        ],
        out_specs=pl.BlockSpec((bm, C), lambda i: (i, 0)),
        compiler_params=pltpu.CompilerParams(
            # Batch axis carries no state -> parallel (lets v7x shard both TCs).
            dimension_semantics=("parallel",),
        ),
    )(x, w1cat, b1cat, w2stk, b2mean)


def merge_split_baseline_ref(x, w1, b1, w2, b2):
    """Pure-JAX reference: 10 folds, stack, mean over fold axis."""
    outs = []
    for f in range(w1.shape[0]):
        h = jnp.maximum(
            jnp.dot(x, w1[f], precision=jax.lax.Precision.HIGHEST) + b1[f], 0.0)
        outs.append(
            jnp.dot(h, w2[f], precision=jax.lax.Precision.HIGHEST) + b2[f])
    return jnp.mean(jnp.stack(outs), axis=0)


if __name__ == "__main__":
    # Small, deterministic example shapes.
    B, D, H, C = 8, 32, 64, 8

    key = jax.random.PRNGKey(0)
    kx, kw1, kb1, kw2, kb2 = jax.random.split(key, 5)

    x = jax.random.normal(kx, (B, D), dtype=jnp.float32)
    w1 = jax.random.normal(kw1, (NUM_FOLDS, D, H), dtype=jnp.float32) * 0.1
    b1 = jax.random.normal(kb1, (NUM_FOLDS, H), dtype=jnp.float32) * 0.1
    w2 = jax.random.normal(kw2, (NUM_FOLDS, H, C), dtype=jnp.float32) * 0.1
    b2 = jax.random.normal(kb2, (NUM_FOLDS, C), dtype=jnp.float32) * 0.1

    out = merge_split_baseline(x, w1, b1, w2, b2)
    out = jax.block_until_ready(out)

    ref = merge_split_baseline_ref(x, w1, b1, w2, b2)
    assert out.shape == (B, C)
    assert jnp.allclose(out, ref, atol=1e-4, rtol=1e-4), "mismatch vs reference"

    print("KERNEL_OK")
</pallas_src>

<mosaic_0001>
module attributes {stable_mosaic.version = 11 : i64} {
  func.func @_fused_ensemble_kernel(%arg0: i32, %arg1: memref<8x32xf32, #tpu.memory_space<vmem>>, %arg2: memref<32x640xf32, #tpu.memory_space<vmem>>, %arg3: memref<1x640xf32, #tpu.memory_space<vmem>>, %arg4: memref<640x8xf32, #tpu.memory_space<vmem>>, %arg5: memref<1x8xf32, #tpu.memory_space<vmem>>, %arg6: memref<8x8xf32, #tpu.memory_space<vmem>>) attributes {dimension_semantics = [#tpu.dimension_semantics<parallel>], iteration_bounds = array<i64: 1>, scalar_prefetch = 0 : i64, scratch_operands = 0 : i64, tpu.core_type = #tpu.core_type<tc>, window_params = [{transform_indices = @transform_0, window_bounds = array<i64: 8, 32>}, {pipeline_mode = #tpu.pipeline_mode<synchronous>, transform_indices = @transform_1, window_bounds = array<i64: 32, 640>}, {pipeline_mode = #tpu.pipeline_mode<synchronous>, transform_indices = @transform_2, window_bounds = array<i64: 1, 640>}, {pipeline_mode = #tpu.pipeline_mode<synchronous>, transform_indices = @transform_3, window_bounds = array<i64: 640, 8>}, {pipeline_mode = #tpu.pipeline_mode<synchronous>, transform_indices = @transform_4, window_bounds = array<i64: 1, 8>}, {transform_indices = @transform_5, window_bounds = array<i64: 8, 8>}]} {
    %c0 = arith.constant 0 : index
    %c0_0 = arith.constant 0 : index
    %0 = vector.load %arg1[%c0, %c0_0] : memref<8x32xf32, #tpu.memory_space<vmem>>, vector<8x32xf32>
    %c0_1 = arith.constant 0 : index
    %c0_2 = arith.constant 0 : index
    %1 = vector.load %arg2[%c0_1, %c0_2] : memref<32x640xf32, #tpu.memory_space<vmem>>, vector<32x640xf32>
    %cst = arith.constant dense<0.000000e+00> : vector<8x640xf32>
    %2 = tpu.matmul %0, %1, %cst {dimension_numbers = #tpu.dot_dimension_numbers<[1], [0], [0], [1], [0, 0, 1, 1], [], []>} : vector<8x32xf32>, vector<32x640xf32>, vector<8x640xf32> -> vector<8x640xf32>
    %c0_3 = arith.constant 0 : index
    %c0_4 = arith.constant 0 : index
    %3 = vector.load %arg3[%c0_3, %c0_4] : memref<1x640xf32, #tpu.memory_space<vmem>>, vector<1x640xf32>
    %4 = vector.broadcast %3 : vector<1x640xf32> to vector<8x640xf32>
    %5 = arith.addf %2, %4 : vector<8x640xf32>
    %cst_5 = arith.constant 0.000000e+00 : f32
    %6 = vector.broadcast %cst_5 : f32 to vector<8x640xf32>
    %7 = arith.maximumf %5, %6 : vector<8x640xf32>
    %c0_6 = arith.constant 0 : index
    %c0_7 = arith.constant 0 : index
    %8 = vector.load %arg4[%c0_6, %c0_7] : memref<640x8xf32, #tpu.memory_space<vmem>>, vector<640x8xf32>
    %cst_8 = arith.constant dense<0.000000e+00> : vector<8x8xf32>
    %9 = tpu.matmul %7, %8, %cst_8 {dimension_numbers = #tpu.dot_dimension_numbers<[1], [0], [0], [1], [0, 0, 1, 1], [], []>} : vector<8x640xf32>, vector<640x8xf32>, vector<8x8xf32> -> vector<8x8xf32>
    %cst_9 = arith.constant 1.000000e-01 : f32
    %10 = vector.broadcast %cst_9 : f32 to vector<8x8xf32>
    %11 = arith.mulf %9, %10 : vector<8x8xf32>
    %c0_10 = arith.constant 0 : index
    %c0_11 = arith.constant 0 : index
    %12 = vector.load %arg5[%c0_10, %c0_11] : memref<1x8xf32, #tpu.memory_space<vmem>>, vector<1x8xf32>
    %13 = vector.broadcast %12 : vector<1x8xf32> to vector<8x8xf32>
    %14 = arith.addf %11, %13 : vector<8x8xf32>
    %c0_12 = arith.constant 0 : index
    %c0_13 = arith.constant 0 : index
    %15 = vector.load %arg6[%c0_12, %c0_13] : memref<8x8xf32, #tpu.memory_space<vmem>>, vector<8x8xf32>
    tpu.vector_store %arg6[%c0_12, %c0_13], %14 {strides = array<i32>} : memref<8x8xf32, #tpu.memory_space<vmem>>, vector<8x8xf32>,
    return
  }
  func.func @transform_0(%arg0: i32) -> (i32, i32) {
    %c0_i32 = arith.constant 0 : i32
    %c0_i32_0 = arith.constant 0 : i32
    return %arg0, %c0_i32 : i32, i32
  }
  func.func @transform_1(%arg0: i32) -> (i32, i32) {
    %c0_i32 = arith.constant 0 : i32
    %c0_i32_0 = arith.constant 0 : i32
    %c0_i32_1 = arith.constant 0 : i32
    return %c0_i32, %c0_i32_0 : i32, i32
  }
  func.func @transform_2(%arg0: i32) -> (i32, i32) {
    %c0_i32 = arith.constant 0 : i32
    %c0_i32_0 = arith.constant 0 : i32
    %c0_i32_1 = arith.constant 0 : i32
    return %c0_i32, %c0_i32_0 : i32, i32
  }
  func.func @transform_3(%arg0: i32) -> (i32, i32) {
    %c0_i32 = arith.constant 0 : i32
    %c0_i32_0 = arith.constant 0 : i32
    %c0_i32_1 = arith.constant 0 : i32
    return %c0_i32, %c0_i32_0 : i32, i32
  }
  func.func @transform_4(%arg0: i32) -> (i32, i32) {
    %c0_i32 = arith.constant 0 : i32
    %c0_i32_0 = arith.constant 0 : i32
    %c0_i32_1 = arith.constant 0 : i32
    return %c0_i32, %c0_i32_0 : i32, i32
  }
  func.func @transform_5(%arg0: i32) -> (i32, i32) {
    %c0_i32 = arith.constant 0 : i32
    %c0_i32_0 = arith.constant 0 : i32
    return %arg0, %c0_i32 : i32, i32
  }
}

</mosaic_0001>

<llo_original>
// kernel: tpu_custom_call.1
$region0: #{tpu_custom_call.1}
  #allocation0 [shape = 'u32[]', space=smem, size = 0x4, offset = 0x4, fixed_abs, tag = 'smem constant byte address 0x4 - core index']
  #allocation1 [shape = 'u32[72,128]{1,0:T(1,128)}', space=vmem, size = 0x9000, scoped, tag = 'internal scratch']
  %s0 = inlined_call_operand.vmem [shape: f32[8,32], index: 0, kind: input, shape index: {}]
  %s1 = inlined_call_operand.vmem [shape: f32[32,640], index: 1, kind: input, shape index: {}]
  %s2 = inlined_call_operand.vmem [shape: f32[1,640], index: 2, kind: input, shape index: {}]
  %s3 = inlined_call_operand.vmem [shape: f32[640,8], index: 3, kind: input, shape index: {}]
  %s4 = inlined_call_operand.vmem [shape: f32[1,8], index: 4, kind: input, shape index: {}]
  %s5 = inlined_call_operand.hbm [shape: f32[8,8], index: 5, kind: output, shape index: {}]
  %s6 = sld [smem:[#allocation0]]
  $region30: #{tpu_custom_call.1} parent=0
    _
  %s8 = ssub.s32 1, %s6
  %s9 = scalar_select 0, %s8, %s6
  $region1: #{tpu_custom_call.1} parent=0
    #allocation2 [shape = 'u8[4096]{0}', space=vmem, size = 0x1000, scoped, tag = 'output window, operand 0, single buffered']
    #allocation3 [shape = 's32[1]{0}', space=sflag, size = 0x4, scoped, tag = 'scoped memory for tpu_custom_call.1']
    %10 = vsyncpa [#allocation3], 0
    // Predicated region
    $region2: #{tpu_custom_call.1} parent=1 // pred_check
      _
    $region3: #{tpu_custom_call.1} parent=1 // pred_check_branch
      %12 = sbr.rel (0) target = $region5
    $region4: #{tpu_custom_call.1} parent=1 // pred_region
      _
    $region5: #{tpu_custom_call.1} parent=1 // pred_fallthru
      _
    // Predicated region
    $region6: #{tpu_custom_call.1} parent=1 // pred_check
      _
    $region7: #{tpu_custom_call.1} parent=1 // pred_check_branch
      %14 = sbr.rel (0) target = $region9
    $region8: #{tpu_custom_call.1} parent=1 // pred_region
      _
    $region9: #{tpu_custom_call.1} parent=1 // pred_fallthru
      _
    // Predicated region
    $region10: #{tpu_custom_call.1} parent=1 // pred_check
      _
    $region11: #{tpu_custom_call.1} parent=1 // pred_check_branch
      %16 = sbr.rel (0) target = $region13
    $region12: #{tpu_custom_call.1} parent=1 // pred_region
      _
    $region13: #{tpu_custom_call.1} parent=1 // pred_fallthru
      _
    // Predicated region
    $region14: #{tpu_custom_call.1} parent=1 // pred_check
      _
    $region15: #{tpu_custom_call.1} parent=1 // pred_check_branch
      %18 = sbr.rel (0) target = $region17
    $region16: #{tpu_custom_call.1} parent=1 // pred_region
      _
    $region17: #{tpu_custom_call.1} parent=1 // pred_fallthru
      _
    // Predicated region
    $region18: #{tpu_custom_call.1} parent=1 // pred_check
      _
    $region19: #{tpu_custom_call.1} parent=1 // pred_check_branch
      %20 = sbr.rel (0) target = $region21
    $region20: #{tpu_custom_call.1} parent=1 // pred_region
      _
    $region21: #{tpu_custom_call.1} parent=1 // pred_fallthru
      _
    %v21 = vld [vmem:[%s0] sm:$0xff]
    %v22 = vld [vmem:[%s1] sm:$0xff]
    %v23 = vld [vmem:[%s1 + $0x8] sm:$0xff]
    %v24 = vld [vmem:[%s1 + $0x10] sm:$0xff]
    %v25 = vld [vmem:[%s1 + $0x18] sm:$0xff]
    %v26 = vld [vmem:[%s1 + $0x20] sm:$0xff]
    %v27 = vld [vmem:[%s1 + $0x28] sm:$0xff]
    %v28 = vld [vmem:[%s1 + $0x30] sm:$0xff]
    %v29 = vld [vmem:[%s1 + $0x38] sm:$0xff]
    %v30 = vld [vmem:[%s1 + $0x40] sm:$0xff]
    %v31 = vld [vmem:[%s1 + $0x48] sm:$0xff]
    %v32 = vld [vmem:[%s1 + $0x50] sm:$0xff]
    %v33 = vld [vmem:[%s1 + $0x58] sm:$0xff]
    %v34 = vld [vmem:[%s1 + $0x60] sm:$0xff]
    %v35 = vld [vmem:[%s1 + $0x68] sm:$0xff]
    %v36 = vld [vmem:[%s1 + $0x70] sm:$0xff]
    %v37 = vld [vmem:[%s1 + $0x78] sm:$0xff]
    %v38 = vld [vmem:[%s1 + $0x80] sm:$0xff]
    %v39 = vld [vmem:[%s1 + $0x88] sm:$0xff]
    %v40 = vld [vmem:[%s1 + $0x90] sm:$0xff]
    %v41 = vld [vmem:[%s1 + $0x98] sm:$0xff]
    %v42 = vld [vmem:[%s2] sm:$0x1f]
    %v44 = vperm.slane %v42, 0
    %v45 = vperm.slane %v42, 1
    %v46 = vperm.slane %v42, 2
    %v47 = vperm.slane %v42, 3
    %v48 = vperm.slane %v42, 4
    %vm54 = vcmask 261120
    %v56 = vsel %vm54, %v21, 0
    %58 = vmatpush.msra.mxu0 0.0
    %59 = vmatpush.msra.mxu0 0.0
    %60 = vmatpush.msra.mxu0 0.0
    %61 = vmatpush.msra.mxu0 0.0
    %62 = vmatpush.msra.mxu0 0.0
    %63 = vmatpush.msra.mxu0 0.0
    %64 = vmatpush.msra.mxu0 0.0
    %65 = vmatpush.msra.mxu0 0.0
    %66 = vmatpush.msra.mxu0 0.0
    %67 = vmatpush.msra.mxu0 0.0
    %68 = vmatpush.msra.mxu0 0.0
    %69 = vmatpush.msra.mxu0 0.0
    %70 = vmatpush.msra.mxu0 %v37
    %71 = vmatpush.msra.mxu0 %v32
    %72 = vmatpush.msra.mxu0 %v27
    %73 = vmatpush.msra.mxu0 %v22
    %74 = vmatmul.f32.gmra.mxu0 %v56
    %v75 = vpop.f32.mrf.mxu0
    %v76 = vadd.f32 %v44, %v75
    %77 = vdwg.mxu0
    %78 = vmatpush.msra.mxu0 0.0
    %79 = vmatpush.msra.mxu0 0.0
    %80 = vmatpush.msra.mxu0 0.0
    %81 = vmatpush.msra.mxu0 0.0
    %82 = vmatpush.msra.mxu0 0.0
    %83 = vmatpush.msra.mxu0 0.0
    %84 = vmatpush.msra.mxu0 0.0
    %85 = vmatpush.msra.mxu0 0.0
    %86 = vmatpush.msra.mxu0 0.0
    %87 = vmatpush.msra.mxu0 0.0
    %88 = vmatpush.msra.mxu0 0.0
    %89 = vmatpush.msra.mxu0 0.0
    %90 = vmatpush.msra.mxu0 %v38
    %91 = vmatpush.msra.mxu0 %v33
    %92 = vmatpush.msra.mxu0 %v28
    %93 = vmatpush.msra.mxu0 %v23
    %94 = vmatmul.f32.gmra.mxu0 %v56
    %v95 = vpop.f32.mrf.mxu0
    %v96 = vadd.f32 %v45, %v95
    %97 = vdwg.mxu0
    %98 = vmatpush.msra.mxu0 0.0
    %99 = vmatpush.msra.mxu0 0.0
    %100 = vmatpush.msra.mxu0 0.0
    %101 = vmatpush.msra.mxu0 0.0
    %102 = vmatpush.msra.mxu0 0.0
    %103 = vmatpush.msra.mxu0 0.0
    %104 = vmatpush.msra.mxu0 0.0
    %105 = vmatpush.msra.mxu0 0.0
    %106 = vmatpush.msra.mxu0 0.0
    %107 = vmatpush.msra.mxu0 0.0
    %108 = vmatpush.msra.mxu0 0.0
    %109 = vmatpush.msra.mxu0 0.0
    %110 = vmatpush.msra.mxu0 %v39
    %111 = vmatpush.msra.mxu0 %v34
    %112 = vmatpush.msra.mxu0 %v29
    %113 = vmatpush.msra.mxu0 %v24
    %114 = vmatmul.f32.gmra.mxu0 %v56
    %v115 = vpop.f32.mrf.mxu0
    %v116 = vadd.f32 %v46, %v115
    %117 = vdwg.mxu0
    %118 = vmatpush.msra.mxu0 0.0
    %119 = vmatpush.msra.mxu0 0.0
    %120 = vmatpush.msra.mxu0 0.0
    %121 = vmatpush.msra.mxu0 0.0
    %122 = vmatpush.msra.mxu0 0.0
    %123 = vmatpush.msra.mxu0 0.0
    %124 = vmatpush.msra.mxu0 0.0
    %125 = vmatpush.msra.mxu0 0.0
    %126 = vmatpush.msra.mxu0 0.0
    %127 = vmatpush.msra.mxu0 0.0
    %128 = vmatpush.msra.mxu0 0.0
    %129 = vmatpush.msra.mxu0 0.0
    %130 = vmatpush.msra.mxu0 %v40
    %131 = vmatpush.msra.mxu0 %v35
    %132 = vmatpush.msra.mxu0 %v30
    %133 = vmatpush.msra.mxu0 %v25
    %134 = vmatmul.f32.gmra.mxu0 %v56
    %v135 = vpop.f32.mrf.mxu0
    %v136 = vadd.f32 %v47, %v135
    %137 = vdwg.mxu0
    %138 = vmatpush.msra.mxu0 0.0
    %139 = vmatpush.msra.mxu0 0.0
    %140 = vmatpush.msra.mxu0 0.0
    %141 = vmatpush.msra.mxu0 0.0
    %142 = vmatpush.msra.mxu0 0.0
    %143 = vmatpush.msra.mxu0 0.0
    %144 = vmatpush.msra.mxu0 0.0
    %145 = vmatpush.msra.mxu0 0.0
    %146 = vmatpush.msra.mxu0 0.0
    %147 = vmatpush.msra.mxu0 0.0
    %148 = vmatpush.msra.mxu0 0.0
    %149 = vmatpush.msra.mxu0 0.0
    %150 = vmatpush.msra.mxu0 %v41
    %151 = vmatpush.msra.mxu0 %v36
    %152 = vmatpush.msra.mxu0 %v31
    %153 = vmatpush.msra.mxu0 %v26
    %154 = vmatmul.f32.gmra.mxu0 %v56
    %v155 = vpop.f32.mrf.mxu0
    %v156 = vadd.f32 %v48, %v155
    %157 = vdwg.mxu0
    %v158 = vmax.f32 %v76, 0.0
    %v159 = vmax.f32 %v96, 0.0
    %v160 = vmax.f32 %v116, 0.0
    %v161 = vmax.f32 %v136, 0.0
    %v162 = vmax.f32 %v156, 0.0
    %v163 = vld [vmem:[%s3] sm:$0xff]
    %v164 = vld [vmem:[%s3 + $0x8] sm:$0xff]
    %v165 = vld [vmem:[%s3 + $0x10] sm:$0xff]
    %v166 = vld [vmem:[%s3 + $0x18] sm:$0xff]
    %v167 = vld [vmem:[%s3 + $0x20] sm:$0xff]
    %v168 = vld [vmem:[%s3 + $0x28] sm:$0xff]
    %v169 = vld [vmem:[%s3 + $0x30] sm:$0xff]
    %v170 = vld [vmem:[%s3 + $0x38] sm:$0xff]
    %v171 = vld [vmem:[%s3 + $0x40] sm:$0xff]
    %v172 = vld [vmem:[%s3 + $0x48] sm:$0xff]
    %v173 = vld [vmem:[%s3 + $0x50] sm:$0xff]
    %v174 = vld [vmem:[%s3 + $0x58] sm:$0xff]
    %v175 = vld [vmem:[%s3 + $0x60] sm:$0xff]
    %v176 = vld [vmem:[%s3 + $0x68] sm:$0xff]
    %v177 = vld [vmem:[%s3 + $0x70] sm:$0xff]
    %v178 = vld [vmem:[%s3 + $0x78] sm:$0xff]
    %v179 = vld [vmem:[%s3 + $0x80] sm:$0xff]
    %v180 = vld [vmem:[%s3 + $0x88] sm:$0xff]
    %v181 = vld [vmem:[%s3 + $0x90] sm:$0xff]
    %v182 = vld [vmem:[%s3 + $0x98] sm:$0xff]
    %v183 = vld [vmem:[%s3 + $0xa0] sm:$0xff]
    %v184 = vld [vmem:[%s3 + $0xa8] sm:$0xff]
    %v185 = vld [vmem:[%s3 + $0xb0] sm:$0xff]
    %v186 = vld [vmem:[%s3 + $0xb8] sm:$0xff]
    %v187 = vld [vmem:[%s3 + $0xc0] sm:$0xff]
    %v188 = vld [vmem:[%s3 + $0xc8] sm:$0xff]
    %v189 = vld [vmem:[%s3 + $0xd0] sm:$0xff]
    %v190 = vld [vmem:[%s3 + $0xd8] sm:$0xff]
    %v191 = vld [vmem:[%s3 + $0xe0] sm:$0xff]
    %v192 = vld [vmem:[%s3 + $0xe8] sm:$0xff]
    %v193 = vld [vmem:[%s3 + $0xf0] sm:$0xff]
    %v194 = vld [vmem:[%s3 + $0xf8] sm:$0xff]
    %v195 = vld [vmem:[%s3 + $0x100] sm:$0xff]
    %v196 = vld [vmem:[%s3 + $0x108] sm:$0xff]
    %v197 = vld [vmem:[%s3 + $0x110] sm:$0xff]
    %v198 = vld [vmem:[%s3 + $0x118] sm:$0xff]
    %v199 = vld [vmem:[%s3 + $0x120] sm:$0xff]
    %v200 = vld [vmem:[%s3 + $0x128] sm:$0xff]
    %v201 = vld [vmem:[%s3 + $0x130] sm:$0xff]
    %v202 = vld [vmem:[%s3 + $0x138] sm:$0xff]
    %v203 = vld [vmem:[%s3 + $0x140] sm:$0xff]
    %v204 = vld [vmem:[%s3 + $0x148] sm:$0xff]
    %v205 = vld [vmem:[%s3 + $0x150] sm:$0xff]
    %v206 = vld [vmem:[%s3 + $0x158] sm:$0xff]
    %v207 = vld [vmem:[%s3 + $0x160] sm:$0xff]
    %v208 = vld [vmem:[%s3 + $0x168] sm:$0xff]
    %v209 = vld [vmem:[%s3 + $0x170] sm:$0xff]
    %v210 = vld [vmem:[%s3 + $0x178] sm:$0xff]
    %v211 = vld [vmem:[%s3 + $0x180] sm:$0xff]
    %v212 = vld [vmem:[%s3 + $0x188] sm:$0xff]
    %v213 = vld [vmem:[%s3 + $0x190] sm:$0xff]
    %v214 = vld [vmem:[%s3 + $0x198] sm:$0xff]
    %v215 = vld [vmem:[%s3 + $0x1a0] sm:$0xff]
    %v216 = vld [vmem:[%s3 + $0x1a8] sm:$0xff]
    %v217 = vld [vmem:[%s3 + $0x1b0] sm:$0xff]
    %v218 = vld [vmem:[%s3 + $0x1b8] sm:$0xff]
    %v219 = vld [vmem:[%s3 + $0x1c0] sm:$0xff]
    %v220 = vld [vmem:[%s3 + $0x1c8] sm:$0xff]
    %v221 = vld [vmem:[%s3 + $0x1d0] sm:$0xff]
    %v222 = vld [vmem:[%s3 + $0x1d8] sm:$0xff]
    %v223 = vld [vmem:[%s3 + $0x1e0] sm:$0xff]
    %v224 = vld [vmem:[%s3 + $0x1e8] sm:$0xff]
    %v225 = vld [vmem:[%s3 + $0x1f0] sm:$0xff]
    %v226 = vld [vmem:[%s3 + $0x1f8] sm:$0xff]
    %v227 = vld [vmem:[%s3 + $0x200] sm:$0xff]
    %v228 = vld [vmem:[%s3 + $0x208] sm:$0xff]
    %v229 = vld [vmem:[%s3 + $0x210] sm:$0xff]
    %v230 = vld [vmem:[%s3 + $0x218] sm:$0xff]
    %v231 = vld [vmem:[%s3 + $0x220] sm:$0xff]
    %v232 = vld [vmem:[%s3 + $0x228] sm:$0xff]
    %v233 = vld [vmem:[%s3 + $0x230] sm:$0xff]
    %v234 = vld [vmem:[%s3 + $0x238] sm:$0xff]
    %v235 = vld [vmem:[%s3 + $0x240] sm:$0xff]
    %v236 = vld [vmem:[%s3 + $0x248] sm:$0xff]
    %v237 = vld [vmem:[%s3 + $0x250] sm:$0xff]
    %v238 = vld [vmem:[%s3 + $0x258] sm:$0xff]
    %v239 = vld [vmem:[%s3 + $0x260] sm:$0xff]
    %v240 = vld [vmem:[%s3 + $0x268] sm:$0xff]
    %v241 = vld [vmem:[%s3 + $0x270] sm:$0xff]
    %v242 = vld [vmem:[%s3 + $0x278] sm:$0xff]
    %243 = vmatpush.msra.mxu0 %v178
    %244 = vmatpush.msra.mxu0 %v177
    %245 = vmatpush.msra.mxu0 %v176
    %246 = vmatpush.msra.mxu0 %v175
    %247 = vmatpush.msra.mxu0 %v174
    %248 = vmatpush.msra.mxu0 %v173
    %249 = vmatpush.msra.mxu0 %v172
    %250 = vmatpush.msra.mxu0 %v171
    %251 = vmatpush.msra.mxu0 %v170
    %252 = vmatpush.msra.mxu0 %v169
    %253 = vmatpush.msra.mxu0 %v168
    %254 = vmatpush.msra.mxu0 %v167
    %255 = vmatpush.msra.mxu0 %v166
    %256 = vmatpush.msra.mxu0 %v165
    %257 = vmatpush.msra.mxu0 %v164
    %258 = vmatpush.msra.mxu0 %v163
    %259 = vmatmul.f32.gmra.mxu0 %v158
    %v260 = vpop.f32.mrf.mxu0
    %v261 = vadd.f32 0.0, %v260
    %262 = vdwg.mxu0
    %263 = vmatpush.msra.mxu0 %v194
    %264 = vmatpush.msra.mxu0 %v193
    %265 = vmatpush.msra.mxu0 %v192
    %266 = vmatpush.msra.mxu0 %v191
    %267 = vmatpush.msra.mxu0 %v190
    %268 = vmatpush.msra.mxu0 %v189
    %269 = vmatpush.msra.mxu0 %v188
    %270 = vmatpush.msra.mxu0 %v187
    %271 = vmatpush.msra.mxu0 %v186
    %272 = vmatpush.msra.mxu0 %v185
    %273 = vmatpush.msra.mxu0 %v184
    %274 = vmatpush.msra.mxu0 %v183
    %275 = vmatpush.msra.mxu0 %v182
    %276 = vmatpush.msra.mxu0 %v181
    %277 = vmatpush.msra.mxu0 %v180
    %278 = vmatpush.msra.mxu0 %v179
    %279 = vmatmul.f32.gmra.mxu0 %v159
    %v280 = vpop.f32.mrf.mxu0
    %v281 = vadd.f32 %v261, %v280
    %282 = vdwg.mxu0
    %283 = vmatpush.msra.mxu0 %v210
    %284 = vmatpush.msra.mxu0 %v209
    %285 = vmatpush.msra.mxu0 %v208
    %286 = vmatpush.msra.mxu0 %v207
    %287 = vmatpush.msra.mxu0 %v206
    %288 = vmatpush.msra.mxu0 %v205
    %289 = vmatpush.msra.mxu0 %v204
    %290 = vmatpush.msra.mxu0 %v203
    %291 = vmatpush.msra.mxu0 %v202
    %292 = vmatpush.msra.mxu0 %v201
    %293 = vmatpush.msra.mxu0 %v200
    %294 = vmatpush.msra.mxu0 %v199
    %295 = vmatpush.msra.mxu0 %v198
    %296 = vmatpush.msra.mxu0 %v197
    %297 = vmatpush.msra.mxu0 %v196
    %298 = vmatpush.msra.mxu0 %v195
    %299 = vmatmul.f32.gmra.mxu0 %v160
    %v300 = vpop.f32.mrf.mxu0
    %v301 = vadd.f32 %v281, %v300
    %302 = vdwg.mxu0
    %303 = vmatpush.msra.mxu0 %v226
    %304 = vmatpush.msra.mxu0 %v225
    %305 = vmatpush.msra.mxu0 %v224
    %306 = vmatpush.msra.mxu0 %v223
    %307 = vmatpush.msra.mxu0 %v222
    %308 = vmatpush.msra.mxu0 %v221
    %309 = vmatpush.msra.mxu0 %v220
    %310 = vmatpush.msra.mxu0 %v219
    %311 = vmatpush.msra.mxu0 %v218
    %312 = vmatpush.msra.mxu0 %v217
    %313 = vmatpush.msra.mxu0 %v216
    %314 = vmatpush.msra.mxu0 %v215
    %315 = vmatpush.msra.mxu0 %v214
    %316 = vmatpush.msra.mxu0 %v213
    %317 = vmatpush.msra.mxu0 %v212
    %318 = vmatpush.msra.mxu0 %v211
    %319 = vmatmul.f32.gmra.mxu0 %v161
    %v320 = vpop.f32.mrf.mxu0
    %v321 = vadd.f32 %v301, %v320
    %322 = vdwg.mxu0
    %323 = vmatpush.msra.mxu0 %v242
    %324 = vmatpush.msra.mxu0 %v241
    %325 = vmatpush.msra.mxu0 %v240
    %326 = vmatpush.msra.mxu0 %v239
    %327 = vmatpush.msra.mxu0 %v238
    %328 = vmatpush.msra.mxu0 %v237
    %329 = vmatpush.msra.mxu0 %v236
    %330 = vmatpush.msra.mxu0 %v235
    %331 = vmatpush.msra.mxu0 %v234
    %332 = vmatpush.msra.mxu0 %v233
    %333 = vmatpush.msra.mxu0 %v232
    %334 = vmatpush.msra.mxu0 %v231
    %335 = vmatpush.msra.mxu0 %v230
    %336 = vmatpush.msra.mxu0 %v229
    %337 = vmatpush.msra.mxu0 %v228
    %338 = vmatpush.msra.mxu0 %v227
    %339 = vmatmul.f32.gmra.mxu0 %v162
    %v340 = vpop.f32.mrf.mxu0
    %v341 = vadd.f32 %v321, %v340
    %342 = vdwg.mxu0
    %v343 = vmul.f32 %v341, 0.1
    %v344 = vld [vmem:[%s4] sm:$0x1]
    %v346 = vperm.slane %v344, 0
    %v348 = vadd.f32 %v343, %v346
    %vm349 = vcmask 64512
    %350 = vst.msk [vmem:[#allocation2] sm:$0xff] %vm349, %v348
    // Predicated region
    $region22: #{tpu_custom_call.1} parent=1 // pred_check
      _
    $region23: #{tpu_custom_call.1} parent=1 // pred_check_branch
      %352 = sbr.rel (0) target = $region25
    $region24: #{tpu_custom_call.1} parent=1 // pred_region
      %354 = vsyncadd [#allocation3], 0
      %s356 = sshll.u32 [#allocation2], 4
      %s357 = int_to_ptr.vmem [resolvable:$true] %s356
      %s358 = sshll.u32 %s5, 4
      %s359 = int_to_ptr.hbm [resolvable:$true] %s358
      %361 = dma.vmem_to_hbm [thread:$0]  %s357, 128, %s359, [#allocation3]
    $region25: #{tpu_custom_call.1} parent=1 // pred_fallthru
      _
    // Predicated region
    $region26: #{tpu_custom_call.1} parent=1 // pred_check
      _
    $region27: #{tpu_custom_call.1} parent=1 // pred_check_branch
      %363 = sbr.rel (0) target = $region29
    $region28: #{tpu_custom_call.1} parent=1 // pred_region
      %365 = dma.done [#allocation3], 128
    $region29: #{tpu_custom_call.1} parent=1 // pred_fallthru
      _
    %366 = vsyncpa [#allocation3], 1

</llo_original>
